<compile_context>
chip_gen: v7x
topology: tpu7x:2x2x1
jax: 0.10.0
libtpu: 0.0.40
codegen_flags: <defaults>
</compile_context>

<pallas_src>
import jax
import jax.numpy as jnp
from jax.experimental import pallas as pl
from jax.experimental.pallas import tpu as pltpu

_LANE = 128


def _cdiv(a, b):
    return (a + b - 1) // b


def _round_up(v, m):
    return _cdiv(v, m) * m


def _pad2(a, rows, cols):
    r, c = a.shape
    return jnp.pad(a, ((0, rows - r), (0, cols - c)))


def _detect_num_tensorcores():
    """Best-effort TensorCore count (2 on v7x, 1 on v5e/v6e). Never raises."""
    try:
        info = pltpu.get_tpu_info()
        for attr in ("num_cores", "num_tensorcores", "tensorcore_count",
                     "core_count"):
            v = getattr(info, attr, None)
            if isinstance(v, int) and v > 0:
                return v
    except Exception:
        pass
    try:
        kind = jax.devices()[0].device_kind.lower()
        if "v7" in kind or "7x" in kind:
            return 2
    except Exception:
        pass
    return 1


def _apply_pow(h, n):
    """h**n with a VPU-friendly lowering for static integer n."""
    if n == 1:
        return h
    if float(n).is_integer():
        return jax.lax.integer_pow(h, int(n))
    return h ** n


def _make_bionet_kernel(n, two_layer, compute_dtype):
    """Builds the fused kernel body. `n`, `two_layer`, dtype are static."""

    def _bio_stage(x, wt):
        h = jnp.dot(x, wt, preferred_element_type=jnp.float32)
        return _apply_pow(jnp.maximum(h, 0.0), n).astype(compute_dtype)

    if two_layer:
        def kernel(x_ref, w1t_ref, w2t_ref, wfct_ref, bfc_ref, o_ref):
            h = _bio_stage(x_ref[...].astype(compute_dtype), w1t_ref[...])
            h = _bio_stage(h, w2t_ref[...])
            out = jnp.dot(h, wfct_ref[...], preferred_element_type=jnp.float32)
            o_ref[...] = (out + bfc_ref[...]).astype(o_ref.dtype)
        return kernel

    def kernel(x_ref, w1t_ref, wfct_ref, bfc_ref, o_ref):
        h = _bio_stage(x_ref[...].astype(compute_dtype), w1t_ref[...])
        out = jnp.dot(h, wfct_ref[...], preferred_element_type=jnp.float32)
        o_ref[...] = (out + bfc_ref[...]).astype(o_ref.dtype)
    return kernel


def _select_batch_tiling(B, batch_tile, row_align, num_cores):
    """Pick (rows-per-step, grid-steps) for the batch axis."""
    tb = min(int(batch_tile), _round_up(B, row_align))
    tb = max(_round_up(tb, row_align), row_align)
    grid_b = _cdiv(B, tb)
    if num_cores >= 2:
        # v7x: keep an even step count so both TensorCores get equal work.
        if grid_b == 1:
            if B > 2 * row_align:
                grid_b = 2
        elif grid_b % 2 == 1:
            grid_b += 1
        tb = max(_round_up(_cdiv(B, grid_b), row_align), row_align)
        grid_b = _cdiv(B, tb)
    return tb, grid_b


class BioNetPallas:
    """Pallas TPU equivalent of BioNet.forward.

    Weight preparation (transpose to (in, out), zero-pad hidden dims to 128
    lanes, cast to the compute dtype) happens ONCE here, not per call.
    Note (n == 0 edge case): padded hidden lanes produce relu(0)**0 == 1, but
    the corresponding downstream weight rows are zero, so results are exact.
    """

    def __init__(self, first_bio_weights, fc_weight, fc_bias, *, n=1,
                 two_layer=False, second_bio_weights=None,
                 compute_dtype=jnp.bfloat16, out_dtype=jnp.float32,
                 batch_tile=2048):
        f32 = jnp.float32
        self.n = n
        self.two_layer = bool(two_layer)
        self.compute_dtype = jnp.dtype(compute_dtype)
        self.out_dtype = jnp.dtype(out_dtype)
        self.batch_tile = int(batch_tile)
        self.num_cores = _detect_num_tensorcores()

        H1, self.d_in = first_bio_weights.shape
        self.d_out = fc_weight.shape[0]
        H1p = _round_up(H1, _LANE)

        # Pre-transposed, hidden dims padded to 128 lanes, cast once.
        self.w1t = _pad2(first_bio_weights.T.astype(f32), self.d_in, H1p
                         ).astype(self.compute_dtype)
        self.bfc = fc_bias.astype(f32).reshape(1, self.d_out)
        if self.two_layer:
            assert second_bio_weights is not None
            H2 = second_bio_weights.shape[0]           # == 100 in the module
            H2p = _round_up(H2, _LANE)
            self.w2t = _pad2(second_bio_weights.T.astype(f32), H1p, H2p
                             ).astype(self.compute_dtype)
            self.wfct = _pad2(fc_weight.T.astype(f32), H2p, self.d_out
                              ).astype(self.compute_dtype)
        else:
            self.w2t = None
            self.wfct = _pad2(fc_weight.T.astype(f32), H1p, self.d_out
                              ).astype(self.compute_dtype)

    def __call__(self, x):
        B, d_in = x.shape
        assert d_in == self.d_in, "input feature dim mismatch"

        # bf16 blocks want 16-row granularity; f32 needs 8.
        sub32 = (jnp.dtype(x.dtype).itemsize < 4 or
                 self.compute_dtype.itemsize < 4)
        row_align = 16 if sub32 else 8
        tb, grid_b = _select_batch_tiling(B, self.batch_tile, row_align,
                                          self.num_cores)

        kernel = _make_bionet_kernel(self.n, self.two_layer,
                                     self.compute_dtype)

        def _full_spec(arr):
            nd = arr.ndim
            return pl.BlockSpec(arr.shape, lambda i, _nd=nd: (0,) * _nd)

        x_spec = pl.BlockSpec((tb, d_in), lambda i: (i, 0))
        # True output width: last block dim == full array dim (legal even <128).
        out_spec = pl.BlockSpec((tb, self.d_out), lambda i: (i, 0))

        if self.two_layer:
            weights = (self.w1t, self.w2t, self.wfct, self.bfc)
        else:
            weights = (self.w1t, self.wfct, self.bfc)
        in_specs = [x_spec] + [_full_spec(w) for w in weights]

        return pl.pallas_call(
            kernel,
            out_shape=jax.ShapeDtypeStruct((B, self.d_out), self.out_dtype),
            grid_spec=pltpu.PrefetchScalarGridSpec(
                num_scalar_prefetch=0,
                grid=(grid_b,),
                in_specs=in_specs,
                out_specs=out_spec,
            ),
            compiler_params=pltpu.CompilerParams(
                dimension_semantics=("parallel",)),
        )(x, *weights)


if __name__ == "__main__":
    key = jax.random.PRNGKey(0)
    k = jax.random.split(key, 8)

    # Small shapes consistent with the module.
    D_in, H1, H2, D_out = 32, 64, 100, 16
    n = 2

    w1 = jax.random.normal(k[1], (H1, D_in), dtype=jnp.float32) * 0.1
    w2 = jax.random.normal(k[2], (H2, H1), dtype=jnp.float32) * 0.1
    fc_w_1l = jax.random.normal(k[3], (D_out, H1), dtype=jnp.float32) * 0.1
    fc_w_2l = jax.random.normal(k[4], (D_out, H2), dtype=jnp.float32) * 0.1
    fc_b = jax.random.normal(k[5], (D_out,), dtype=jnp.float32) * 0.1

    def ref_fwd(x, fc_w, two_layer):
        h = jnp.maximum(x @ w1.T, 0.0) ** n
        if two_layer:
            h = jnp.maximum(h @ w2.T, 0.0) ** n
        return h @ fc_w.T + fc_b

    # --- 1) single-layer path, small batch, f32 compute (tight check) -------
    net1 = BioNetPallas(w1, fc_w_1l, fc_b, n=n, two_layer=False,
                        compute_dtype=jnp.float32)
    x1 = jax.random.normal(k[0], (8, D_in), dtype=jnp.float32)
    out1 = jax.block_until_ready(net1(x1))
    ref1 = ref_fwd(x1, fc_w_1l, False)
    assert out1.shape == ref1.shape
    assert jnp.allclose(out1, ref1, atol=1e-4, rtol=1e-4)

    # --- 2) two-layer path, ragged batch (cdiv grid + clipped last block) ---
    net2 = BioNetPallas(w1, fc_w_2l, fc_b, n=n, two_layer=True,
                        second_bio_weights=w2, compute_dtype=jnp.float32)
    x2 = jax.random.normal(k[6], (36, D_in), dtype=jnp.float32)
    out2 = jax.block_until_ready(net2(x2))
    ref2 = ref_fwd(x2, fc_w_2l, True)
    assert out2.shape == ref2.shape
    assert jnp.allclose(out2, ref2, atol=1e-4, rtol=1e-4)

    # --- 3) large ragged batch, multi-step grid, default bf16 compute -------
    net3 = BioNetPallas(w1, fc_w_2l, fc_b, n=n, two_layer=True,
                        second_bio_weights=w2)   # bf16 operands, f32 accum/out
    x3 = jax.random.normal(k[7], (4100, D_in), dtype=jnp.float32)
    out3 = jax.block_until_ready(net3(x3))
    ref3 = ref_fwd(x3, fc_w_2l, True)
    assert out3.shape == ref3.shape
    assert jnp.allclose(out3, ref3, atol=2e-1, rtol=2e-1)

    print("KERNEL_OK")
</pallas_src>

<mosaic_0001>
module attributes {stable_mosaic.version = 11 : i64} {
  func.func @kernel(%arg0: i32, %arg1: memref<8x32xf32, #tpu.memory_space<vmem>>, %arg2: memref<32x128xf32, #tpu.memory_space<vmem>>, %arg3: memref<128x16xf32, #tpu.memory_space<vmem>>, %arg4: memref<1x16xf32, #tpu.memory_space<vmem>>, %arg5: memref<8x16xf32, #tpu.memory_space<vmem>>) attributes {dimension_semantics = [#tpu.dimension_semantics<parallel>], iteration_bounds = array<i64: 1>, scalar_prefetch = 0 : i64, scratch_operands = 0 : i64, tpu.core_type = #tpu.core_type<tc>, window_params = [{transform_indices = @transform_0, window_bounds = array<i64: 8, 32>}, {pipeline_mode = #tpu.pipeline_mode<synchronous>, transform_indices = @transform_1, window_bounds = array<i64: 32, 128>}, {pipeline_mode = #tpu.pipeline_mode<synchronous>, transform_indices = @transform_2, window_bounds = array<i64: 128, 16>}, {pipeline_mode = #tpu.pipeline_mode<synchronous>, transform_indices = @transform_3, window_bounds = array<i64: 1, 16>}, {transform_indices = @transform_4, window_bounds = array<i64: 8, 16>}]} {
    %c0 = arith.constant 0 : index
    %c0_0 = arith.constant 0 : index
    %0 = vector.load %arg1[%c0, %c0_0] : memref<8x32xf32, #tpu.memory_space<vmem>>, vector<8x32xf32>
    %c0_1 = arith.constant 0 : index
    %c0_2 = arith.constant 0 : index
    %1 = vector.load %arg2[%c0_1, %c0_2] : memref<32x128xf32, #tpu.memory_space<vmem>>, vector<32x128xf32>
    %cst = arith.constant dense<0.000000e+00> : vector<8x128xf32>
    %2 = tpu.matmul %0, %1, %cst {dimension_numbers = #tpu.dot_dimension_numbers<[1], [0], [0], [1], [0, 0, 1, 1], [], []>} : vector<8x32xf32>, vector<32x128xf32>, vector<8x128xf32> -> vector<8x128xf32>
    %cst_3 = arith.constant 0.000000e+00 : f32
    %3 = vector.broadcast %cst_3 : f32 to vector<8x128xf32>
    %4 = arith.maximumf %2, %3 : vector<8x128xf32>
    %5 = arith.mulf %4, %4 : vector<8x128xf32>
    %c0_4 = arith.constant 0 : index
    %c0_5 = arith.constant 0 : index
    %6 = vector.load %arg3[%c0_4, %c0_5] : memref<128x16xf32, #tpu.memory_space<vmem>>, vector<128x16xf32>
    %cst_6 = arith.constant dense<0.000000e+00> : vector<8x16xf32>
    %7 = tpu.matmul %5, %6, %cst_6 {dimension_numbers = #tpu.dot_dimension_numbers<[1], [0], [0], [1], [0, 0, 1, 1], [], []>} : vector<8x128xf32>, vector<128x16xf32>, vector<8x16xf32> -> vector<8x16xf32>
    %c0_7 = arith.constant 0 : index
    %c0_8 = arith.constant 0 : index
    %8 = vector.load %arg4[%c0_7, %c0_8] : memref<1x16xf32, #tpu.memory_space<vmem>>, vector<1x16xf32>
    %9 = vector.broadcast %8 : vector<1x16xf32> to vector<8x16xf32>
    %10 = arith.addf %7, %9 : vector<8x16xf32>
    %c0_9 = arith.constant 0 : index
    %c0_10 = arith.constant 0 : index
    %11 = vector.load %arg5[%c0_9, %c0_10] : memref<8x16xf32, #tpu.memory_space<vmem>>, vector<8x16xf32>
    tpu.vector_store %arg5[%c0_9, %c0_10], %10 {strides = array<i32>} : memref<8x16xf32, #tpu.memory_space<vmem>>, vector<8x16xf32>,
    return
  }
  func.func @transform_0(%arg0: i32) -> (i32, i32) {
    %c0_i32 = arith.constant 0 : i32
    %c0_i32_0 = arith.constant 0 : i32
    return %arg0, %c0_i32 : i32, i32
  }
  func.func @transform_1(%arg0: i32) -> (i32, i32) {
    %c0_i32 = arith.constant 0 : i32
    %c0_i32_0 = arith.constant 0 : i32
    %c0_i32_1 = arith.constant 0 : i32
    return %c0_i32, %c0_i32_0 : i32, i32
  }
  func.func @transform_2(%arg0: i32) -> (i32, i32) {
    %c0_i32 = arith.constant 0 : i32
    %c0_i32_0 = arith.constant 0 : i32
    %c0_i32_1 = arith.constant 0 : i32
    return %c0_i32, %c0_i32_0 : i32, i32
  }
  func.func @transform_3(%arg0: i32) -> (i32, i32) {
    %c0_i32 = arith.constant 0 : i32
    %c0_i32_0 = arith.constant 0 : i32
    %c0_i32_1 = arith.constant 0 : i32
    return %c0_i32, %c0_i32_0 : i32, i32
  }
  func.func @transform_4(%arg0: i32) -> (i32, i32) {
    %c0_i32 = arith.constant 0 : i32
    %c0_i32_0 = arith.constant 0 : i32
    return %arg0, %c0_i32 : i32, i32
  }
}

</mosaic_0001>

<llo_original>
// kernel: tpu_custom_call.1
$region0: #{tpu_custom_call.1}
  #allocation0 [shape = 'u32[]', space=smem, size = 0x4, offset = 0x4, fixed_abs, tag = 'smem constant byte address 0x4 - core index']
  #allocation1 [shape = 'u32[144,128]{1,0:T(1,128)}', space=vmem, size = 0x12000, scoped, tag = 'internal scratch']
  %s0 = inlined_call_operand.vmem [shape: f32[8,32], index: 0, kind: input, shape index: {}]
  %s1 = inlined_call_operand.vmem [shape: f32[32,128], index: 1, kind: input, shape index: {}]
  %s2 = inlined_call_operand.vmem [shape: f32[128,16], index: 2, kind: input, shape index: {}]
  %s3 = inlined_call_operand.vmem [shape: f32[1,16], index: 3, kind: input, shape index: {}]
  %s4 = inlined_call_operand.hbm [shape: f32[8,16], index: 4, kind: output, shape index: {}]
  %s5 = sld [smem:[#allocation0]]
  $region26: #{tpu_custom_call.1} parent=0
    _
  %s7 = ssub.s32 1, %s5
  %s8 = scalar_select 0, %s7, %s5
  $region1: #{tpu_custom_call.1} parent=0
    #allocation2 [shape = 'u8[4096]{0}', space=vmem, size = 0x1000, scoped, tag = 'output window, operand 0, single buffered']
    #allocation3 [shape = 's32[1]{0}', space=sflag, size = 0x4, scoped, tag = 'scoped memory for tpu_custom_call.1']
    %9 = vsyncpa [#allocation3], 0
    // Predicated region
    $region2: #{tpu_custom_call.1} parent=1 // pred_check
      _
    $region3: #{tpu_custom_call.1} parent=1 // pred_check_branch
      %11 = sbr.rel (0) target = $region5
    $region4: #{tpu_custom_call.1} parent=1 // pred_region
      _
    $region5: #{tpu_custom_call.1} parent=1 // pred_fallthru
      _
    // Predicated region
    $region6: #{tpu_custom_call.1} parent=1 // pred_check
      _
    $region7: #{tpu_custom_call.1} parent=1 // pred_check_branch
      %13 = sbr.rel (0) target = $region9
    $region8: #{tpu_custom_call.1} parent=1 // pred_region
      _
    $region9: #{tpu_custom_call.1} parent=1 // pred_fallthru
      _
    // Predicated region
    $region10: #{tpu_custom_call.1} parent=1 // pred_check
      _
    $region11: #{tpu_custom_call.1} parent=1 // pred_check_branch
      %15 = sbr.rel (0) target = $region13
    $region12: #{tpu_custom_call.1} parent=1 // pred_region
      _
    $region13: #{tpu_custom_call.1} parent=1 // pred_fallthru
      _
    // Predicated region
    $region14: #{tpu_custom_call.1} parent=1 // pred_check
      _
    $region15: #{tpu_custom_call.1} parent=1 // pred_check_branch
      %17 = sbr.rel (0) target = $region17
    $region16: #{tpu_custom_call.1} parent=1 // pred_region
      _
    $region17: #{tpu_custom_call.1} parent=1 // pred_fallthru
      _
    %v18 = vld [vmem:[%s0] sm:$0xff]
    %v19 = vld [vmem:[%s1] sm:$0xff]
    %v20 = vld [vmem:[%s1 + $0x8] sm:$0xff]
    %v21 = vld [vmem:[%s1 + $0x10] sm:$0xff]
    %v22 = vld [vmem:[%s1 + $0x18] sm:$0xff]
    %vm23 = vcmask 261120
    %v25 = vsel %vm23, %v18, 0
    %27 = vmatprep.subr.mxu0 0.0
    %28 = vmatpush1.msra.mxu0 %v19
    %29 = vmatprep.subr.mxu0 0.0
    %30 = vmatpush1.msra.mxu0 %v20
    %31 = vmatprep.subr.mxu0 0.0
    %32 = vmatpush1.msra.mxu0 %v21
    %33 = vmatprep.subr.mxu0 0.0
    %34 = vmatpush1.msra.mxu0 %v22
    %35 = vmatprep.subr.mxu0 0.0
    %36 = vmatpush1.msra.mxu0 0.0
    %37 = vmatprep.subr.mxu0 0.0
    %38 = vmatpush1.msra.mxu0 0.0
    %39 = vmatprep.subr.mxu0 0.0
    %40 = vmatpush1.msra.mxu0 0.0
    %41 = vmatprep.subr.mxu0 0.0
    %42 = vmatpush1.msra.mxu0 0.0
    %43 = vmatprep.subr.mxu0 0.0
    %44 = vmatpush1.msra.mxu0 0.0
    %45 = vmatprep.subr.mxu0 0.0
    %46 = vmatpush1.msra.mxu0 0.0
    %47 = vmatprep.subr.mxu0 0.0
    %48 = vmatpush1.msra.mxu0 0.0
    %49 = vmatprep.subr.mxu0 0.0
    %50 = vmatpush1.msra.mxu0 0.0
    %51 = vmatprep.subr.mxu0 0.0
    %52 = vmatpush1.msra.mxu0 0.0
    %53 = vmatprep.subr.mxu0 0.0
    %54 = vmatpush1.msra.mxu0 0.0
    %55 = vmatprep.subr.mxu0 0.0
    %56 = vmatpush1.msra.mxu0 0.0
    %57 = vmatprep.subr.mxu0 0.0
    %58 = vmatpush1.msra.mxu0 0.0
    %59 = vmatprep.subr.mxu0 0.0
    %60 = vmatpush1.msra.mxu0 0.0
    %61 = vmatprep.subr.mxu0 0.0
    %62 = vmatpush1.msra.mxu0 0.0
    %63 = vmatprep.subr.mxu0 0.0
    %64 = vmatpush1.msra.mxu0 0.0
    %65 = vmatprep.subr.mxu0 0.0
    %66 = vmatpush1.msra.mxu0 0.0
    %67 = vmatprep.subr.mxu0 0.0
    %68 = vmatpush1.msra.mxu0 0.0
    %69 = vmatprep.subr.mxu0 0.0
    %70 = vmatpush1.msra.mxu0 0.0
    %71 = vmatprep.subr.mxu0 0.0
    %72 = vmatpush1.msra.mxu0 0.0
    %73 = vmatprep.subr.mxu0 0.0
    %74 = vmatpush1.msra.mxu0 0.0
    %75 = vmatprep.subr.mxu0 0.0
    %76 = vmatpush1.msra.mxu0 0.0
    %77 = vmatprep.subr.mxu0 0.0
    %78 = vmatpush1.msra.mxu0 0.0
    %79 = vmatprep.subr.mxu0 0.0
    %80 = vmatpush1.msra.mxu0 0.0
    %81 = vmatprep.subr.mxu0 0.0
    %82 = vmatpush1.msra.mxu0 0.0
    %83 = vmatprep.subr.mxu0 0.0
    %84 = vmatpush1.msra.mxu0 0.0
    %85 = vmatprep.subr.mxu0 0.0
    %86 = vmatpush1.msra.mxu0 0.0
    %87 = vmatprep.subr.mxu0 0.0
    %88 = vmatpush1.msra.mxu0 0.0
    %89 = vmatprep.subr.mxu0 0.0
    %90 = vmatpush1.msra.mxu0 0.0
    %91 = vmatprep.mubr.f32.mxu0 0.0
    %92 = vmatmul.mubr.f32.gmra.mrb[0].mxu0 %v25
    %v93 = vpop.f32.mrb[0].mxu0
    %v94 = vadd.f32 0.0, %v93
    %v95 = vpop.f32.mrb[0].mxu0
    %96 = vdwg.mxu0
    %v97 = vmax.f32 %v94, 0.0
    %v98 = vmul.f32 %v97, %v97
    %v99 = vld [vmem:[%s2] sm:$0xff]
    %v100 = vld [vmem:[%s2 + $0x8] sm:$0xff]
    %v101 = vld [vmem:[%s2 + $0x10] sm:$0xff]
    %v102 = vld [vmem:[%s2 + $0x18] sm:$0xff]
    %v103 = vld [vmem:[%s2 + $0x20] sm:$0xff]
    %v104 = vld [vmem:[%s2 + $0x28] sm:$0xff]
    %v105 = vld [vmem:[%s2 + $0x30] sm:$0xff]
    %v106 = vld [vmem:[%s2 + $0x38] sm:$0xff]
    %v107 = vld [vmem:[%s2 + $0x40] sm:$0xff]
    %v108 = vld [vmem:[%s2 + $0x48] sm:$0xff]
    %v109 = vld [vmem:[%s2 + $0x50] sm:$0xff]
    %v110 = vld [vmem:[%s2 + $0x58] sm:$0xff]
    %v111 = vld [vmem:[%s2 + $0x60] sm:$0xff]
    %v112 = vld [vmem:[%s2 + $0x68] sm:$0xff]
    %v113 = vld [vmem:[%s2 + $0x70] sm:$0xff]
    %v114 = vld [vmem:[%s2 + $0x78] sm:$0xff]
    %v115 = vld [vmem:[%s3] sm:$0x1]
    %v117 = vlaneseq
    %v118 = vshrl.u32 %v117, 7
    %v119 = vsub.s32 0, %v118
    %v120 = vrot.slane %v115, %v119
    %122 = vmatprep.subr.mxu0 0.0
    %123 = vmatpush1.msra.mxu0 %v99
    %124 = vmatprep.subr.mxu0 0.0
    %125 = vmatpush1.msra.mxu0 %v100
    %126 = vmatprep.subr.mxu0 0.0
    %127 = vmatpush1.msra.mxu0 %v101
    %128 = vmatprep.subr.mxu0 0.0
    %129 = vmatpush1.msra.mxu0 %v102
    %130 = vmatprep.subr.mxu0 0.0
    %131 = vmatpush1.msra.mxu0 %v103
    %132 = vmatprep.subr.mxu0 0.0
    %133 = vmatpush1.msra.mxu0 %v104
    %134 = vmatprep.subr.mxu0 0.0
    %135 = vmatpush1.msra.mxu0 %v105
    %136 = vmatprep.subr.mxu0 0.0
    %137 = vmatpush1.msra.mxu0 %v106
    %138 = vmatprep.subr.mxu0 0.0
    %139 = vmatpush1.msra.mxu0 %v107
    %140 = vmatprep.subr.mxu0 0.0
    %141 = vmatpush1.msra.mxu0 %v108
    %142 = vmatprep.subr.mxu0 0.0
    %143 = vmatpush1.msra.mxu0 %v109
    %144 = vmatprep.subr.mxu0 0.0
    %145 = vmatpush1.msra.mxu0 %v110
    %146 = vmatprep.subr.mxu0 0.0
    %147 = vmatpush1.msra.mxu0 %v111
    %148 = vmatprep.subr.mxu0 0.0
    %149 = vmatpush1.msra.mxu0 %v112
    %150 = vmatprep.subr.mxu0 0.0
    %151 = vmatpush1.msra.mxu0 %v113
    %152 = vmatprep.subr.mxu0 0.0
    %153 = vmatpush1.msra.mxu0 %v114
    %154 = vmatprep.subr.mxu0 0.0
    %155 = vmatpush1.msra.mxu0 0.0
    %156 = vmatprep.subr.mxu0 0.0
    %157 = vmatpush1.msra.mxu0 0.0
    %158 = vmatprep.subr.mxu0 0.0
    %159 = vmatpush1.msra.mxu0 0.0
    %160 = vmatprep.subr.mxu0 0.0
    %161 = vmatpush1.msra.mxu0 0.0
    %162 = vmatprep.subr.mxu0 0.0
    %163 = vmatpush1.msra.mxu0 0.0
    %164 = vmatprep.subr.mxu0 0.0
    %165 = vmatpush1.msra.mxu0 0.0
    %166 = vmatprep.subr.mxu0 0.0
    %167 = vmatpush1.msra.mxu0 0.0
    %168 = vmatprep.subr.mxu0 0.0
    %169 = vmatpush1.msra.mxu0 0.0
    %170 = vmatprep.subr.mxu0 0.0
    %171 = vmatpush1.msra.mxu0 0.0
    %172 = vmatprep.subr.mxu0 0.0
    %173 = vmatpush1.msra.mxu0 0.0
    %174 = vmatprep.subr.mxu0 0.0
    %175 = vmatpush1.msra.mxu0 0.0
    %176 = vmatprep.subr.mxu0 0.0
    %177 = vmatpush1.msra.mxu0 0.0
    %178 = vmatprep.subr.mxu0 0.0
    %179 = vmatpush1.msra.mxu0 0.0
    %180 = vmatprep.subr.mxu0 0.0
    %181 = vmatpush1.msra.mxu0 0.0
    %182 = vmatprep.subr.mxu0 0.0
    %183 = vmatpush1.msra.mxu0 0.0
    %184 = vmatprep.subr.mxu0 0.0
    %185 = vmatpush1.msra.mxu0 0.0
    %186 = vmatprep.mubr.f32.mxu0 0.0
    %187 = vmatmul.mubr.f32.gmra.mrb[0].mxu0 %v98
    %v188 = vpop.f32.mrb[0].mxu0
    %v189 = vadd.f32 %v120, %v188
    %v190 = vpop.f32.mrb[0].mxu0
    %191 = vdwg.mxu0
    %vm192 = vcmask 130048
    %193 = vst.msk [vmem:[#allocation2] sm:$0xff] %vm192, %v189
    // Predicated region
    $region18: #{tpu_custom_call.1} parent=1 // pred_check
      _
    $region19: #{tpu_custom_call.1} parent=1 // pred_check_branch
      %195 = sbr.rel (0) target = $region21
    $region20: #{tpu_custom_call.1} parent=1 // pred_region
      %s197 = ssub.s32 128, 128
      %198 = vsyncadd [#allocation3], %s197
      %s200 = sshll.u32 [#allocation2], 4
      %s201 = int_to_ptr.vmem [resolvable:$true] %s200
      %203 = dma.vmem_to_hbm [thread:$0]  %s201, 128, %s4, [#allocation3]
    $region21: #{tpu_custom_call.1} parent=1 // pred_fallthru
      _
    // Predicated region
    $region22: #{tpu_custom_call.1} parent=1 // pred_check
      _
    $region23: #{tpu_custom_call.1} parent=1 // pred_check_branch
      %205 = sbr.rel (0) target = $region25
    $region24: #{tpu_custom_call.1} parent=1 // pred_region
      %206 = dma.done [#allocation3], 128
    $region25: #{tpu_custom_call.1} parent=1 // pred_fallthru
      _
    %207 = vsyncpa [#allocation3], 1

</llo_original>
